<compile_context>
chip_gen: v7x
topology: tpu7x:2x2x1
jax: 0.10.0
libtpu: 0.0.40
codegen_flags: <defaults>
</compile_context>

<pallas_src>
import math
from functools import partial

import jax
import jax.numpy as jnp
from jax.experimental import pallas as pl
from jax.experimental.pallas import tpu as pltpu


# packed temporal table layout: month(13) | day(32) | weekday(7) | hour(24)
_TEMB_OFFSETS = (0, 13, 45, 52)
_TEMB_ROWS = 13 + 32 + 7 + 24  # 76


def _input_layer_kernel(x_ref, w_ref, pb_ref, tab_ref, idx_ref, o_ref):
    """One (batch, row-tile) block: out = x @ W + (pe + bias) + temporal-emb."""
    # Conv1d(kernel_size=1) == matmul over the feature axis (MXU), f32 accumulate.
    y = jnp.dot(x_ref[...], w_ref[...], preferred_element_type=jnp.float32)

    # Temporal-embedding gather as a one-hot matmul against the tiny packed
    # table (76 x D). The MXU is nearly idle (K = C_in is tiny), so this is
    # effectively free and removes an [M, D] HBM round trip.
    gidx = idx_ref[...]                                   # [TL, 4] int32 (offsets pre-added)
    tl, ntab = gidx.shape[0], tab_ref.shape[0]
    rows = jax.lax.broadcasted_iota(jnp.int32, (tl, ntab), 1)
    multi_hot = ((rows == gidx[:, 0:1]).astype(jnp.float32)
                 + (rows == gidx[:, 1:2]).astype(jnp.float32)
                 + (rows == gidx[:, 2:3]).astype(jnp.float32)
                 + (rows == gidx[:, 3:4]).astype(jnp.float32))
    temb = jnp.dot(multi_hot, tab_ref[...], preferred_element_type=jnp.float32)

    # bias is pre-folded into pb_ref (positional table) -> one fused VPU add chain.
    o_ref[...] = (y + pb_ref[...] + temb).astype(o_ref.dtype)


def position_encode(L, D):
    """Matches Input_Layer.position_encode (assumes D even)."""
    position = jnp.arange(L, dtype=jnp.float32)[:, None]                  # [L, 1]
    temp = jnp.arange(0, D, 2, dtype=jnp.float32) * (-(math.log(10000.0) / D))
    temp = jnp.exp(temp)[None, :]                                         # [1, D//2]
    angles = position @ temp                                              # [L, D//2]
    pe = jnp.ones((L, D), dtype=jnp.float32)
    pe = pe.at[:, 0::2].set(jnp.sin(angles))
    pe = pe.at[:, 1::2].set(jnp.cos(angles))
    return pe


def _bf16_exact(a):
    # Test-data helper only: values exactly representable in bf16 so the check
    # against the pure-JAX reference is insensitive to MXU pass precision.
    return a.astype(jnp.bfloat16).astype(jnp.float32)


def init_params(key, third_dim, d_embedding):
    """Deterministic parameter init (shapes from Input_Layer.__init__, freq='h')."""
    ks = jax.random.split(key, 6)
    scale = 1.0 / math.sqrt(third_dim)
    return {
        # Conv1d(in=third_dim, out=d_embedding, k=1) weight stored as [C_in, D]
        "w": _bf16_exact(jax.random.uniform(ks[0], (third_dim, d_embedding),
                                            jnp.float32, -scale, scale)),
        "b": jax.random.uniform(ks[1], (d_embedding,), jnp.float32, -scale, scale),
        "hour_embed":    _bf16_exact(jax.random.normal(ks[2], (24, d_embedding), jnp.float32)),
        "weekday_embed": _bf16_exact(jax.random.normal(ks[3], (7,  d_embedding), jnp.float32)),
        "day_embed":     _bf16_exact(jax.random.normal(ks[4], (32, d_embedding), jnp.float32)),
        "month_embed":   _bf16_exact(jax.random.normal(ks[5], (13, d_embedding), jnp.float32)),
    }


def _choose_row_tile(L, cin, d_pad, budget_bytes=20 * 1024 * 1024):
    """Row tile sized to a conservative VMEM budget (safe on v7x's 64 MiB)."""
    # double-buffered f32/int32 bytes per row: x(cin) + idx(4) + pe(d_pad) + out(d_pad)
    per_row = 2 * 4 * (cin + 4 + 2 * d_pad)
    tl = max(8, budget_bytes // per_row)
    tl = int(min(tl, 1024, L))
    if tl < L:
        tl = max(8, (tl // 8) * 8)        # keep the sublane constraint
    return tl


@partial(jax.jit, static_argnames=("pe",))
def input_layer_forward(x, x_mask, params, pe=True):
    """x: [B, L, C_in] float; x_mask: [B, L, >=4] int (month, day, weekday, hour)."""
    B, L, Cin = x.shape
    D = params["w"].shape[1]
    assert D % 2 == 0, "position_encode assumes an even d_embedding"

    # Lane-dense output: pad tiny D up to 128 lanes (sliced back at the end).
    Dp = 128 if D < 128 else D

    def pad_d(a):
        if a.shape[-1] == Dp:
            return a
        return jnp.pad(a, [(0, 0)] * (a.ndim - 1) + [(0, Dp - a.shape[-1])])

    w = pad_d(params["w"].astype(jnp.float32))                       # [Cin, Dp]

    # Positional encoding + bias folded into one small [L, Dp] table.
    pe_tab = position_encode(L, D) if pe else jnp.zeros((L, D), jnp.float32)
    pe_bias = pad_d((pe_tab + params["b"][None, :]).astype(jnp.float32))

    # Packed temporal-embedding table (tiny, stays resident in VMEM).
    tab = jnp.concatenate([params["month_embed"], params["day_embed"],
                           params["weekday_embed"], params["hour_embed"]],
                          axis=0).astype(jnp.float32)                # [76, D]
    ntab_p = ((_TEMB_ROWS + 7) // 8) * 8                             # 80
    tab = pad_d(jnp.pad(tab, ((0, ntab_p - _TEMB_ROWS), (0, 0))))    # [80, Dp]

    if x_mask is not None:
        offs = jnp.array(_TEMB_OFFSETS, dtype=jnp.int32)
        gidx = x_mask[..., :4].astype(jnp.int32) + offs[None, None, :]   # [B, L, 4]
    else:
        gidx = jnp.zeros((B, L, 4), jnp.int32)
        tab = jnp.zeros_like(tab)     # selected rows contribute exactly 0

    TL = _choose_row_tile(L, Cin, Dp)
    grid = (B, pl.cdiv(L, TL))

    M = B * L
    cost = pl.CostEstimate(
        flops=int(2 * M * Dp * (Cin + ntab_p)),
        transcendentals=0,
        bytes_accessed=int(4 * (M * Cin + M * 4 + M * Dp
                                + L * Dp + Cin * Dp + ntab_p * Dp)),
    )

    out = pl.pallas_call(
        _input_layer_kernel,
        out_shape=jax.ShapeDtypeStruct((B, L, Dp), jnp.float32),
        grid=grid,
        in_specs=[
            pl.BlockSpec((None, TL, Cin), lambda b, l: (b, l, 0)),   # x tile
            pl.BlockSpec((Cin, Dp),       lambda b, l: (0, 0)),      # conv weight (untiled)
            pl.BlockSpec((TL, Dp),        lambda b, l: (l, 0)),      # pe + bias table
            pl.BlockSpec((ntab_p, Dp),    lambda b, l: (0, 0)),      # packed temporal table
            pl.BlockSpec((None, TL, 4),   lambda b, l: (b, l, 0)),   # int32 indices
        ],
        out_specs=pl.BlockSpec((None, TL, Dp), lambda b, l: (b, l, 0)),
        compiler_params=pltpu.CompilerParams(
            dimension_semantics=("parallel", "parallel"),
            vmem_limit_bytes=32 * 1024 * 1024),
        cost_estimate=cost,
    )(x.astype(jnp.float32), w, pe_bias, tab, gidx)

    return out if Dp == D else out[..., :D]


def reference_forward(x, x_mask, params, pe=True):
    """Pure-JAX reference for correctness checking."""
    B, L, Cin = x.shape
    D = params["w"].shape[1]
    y = x.astype(jnp.float32) @ params["w"] + params["b"][None, None, :]
    if pe:
        y = y + position_encode(L, D)[None]
    if x_mask is not None:
        idx = x_mask.astype(jnp.int32)
        y = y + (params["month_embed"][idx[:, :, 0]]
                 + params["day_embed"][idx[:, :, 1]]
                 + params["weekday_embed"][idx[:, :, 2]]
                 + params["hour_embed"][idx[:, :, 3]])
    return y


if __name__ == "__main__":
    B, L, Cin, D = 2, 8, 4, 32          # (batch, second_dim, third_dim, d_embedding)
    key = jax.random.PRNGKey(0)
    kx, kmask, kparams = jax.random.split(key, 3)

    params = init_params(kparams, Cin, D)
    x = _bf16_exact(jax.random.normal(kx, (B, L, Cin), jnp.float32))

    km, kd, kw, kh = jax.random.split(kmask, 4)
    x_mask = jnp.stack(
        [
            jax.random.randint(km, (B, L), 0, 13),   # month
            jax.random.randint(kd, (B, L), 0, 32),   # day
            jax.random.randint(kw, (B, L), 0, 7),    # weekday
            jax.random.randint(kh, (B, L), 0, 24),   # hour
        ],
        axis=-1,
    )

    out = input_layer_forward(x, x_mask, params, pe=True)
    out = jax.block_until_ready(out)

    ref = reference_forward(x, x_mask, params, pe=True)
    assert out.shape == (B, L, D)
    assert jnp.allclose(out, ref, atol=1e-5, rtol=1e-5), "mismatch vs JAX reference"

    print("KERNEL_OK")
</pallas_src>

<mosaic_0001>
module attributes {stable_mosaic.version = 11 : i64} {
  func.func @_input_layer_kernel(%arg0: i32, %arg1: i32, %arg2: memref<1x8x4xf32, #tpu.memory_space<vmem>>, %arg3: memref<4x128xf32, #tpu.memory_space<vmem>>, %arg4: memref<8x128xf32, #tpu.memory_space<vmem>>, %arg5: memref<80x128xf32, #tpu.memory_space<vmem>>, %arg6: memref<1x8x4xi32, #tpu.memory_space<vmem>>, %arg7: memref<1x8x128xf32, #tpu.memory_space<vmem>>) attributes {dimension_semantics = [#tpu.dimension_semantics<parallel>, #tpu.dimension_semantics<parallel>], iteration_bounds = array<i64: 2, 1>, scalar_prefetch = 0 : i64, scratch_operands = 0 : i64, tpu.core_type = #tpu.core_type<tc>, window_params = [{transform_indices = @transform_0, window_bounds = array<i64: 1, 8, 4>}, {pipeline_mode = #tpu.pipeline_mode<synchronous>, transform_indices = @transform_1, window_bounds = array<i64: 4, 128>}, {transform_indices = @transform_2, window_bounds = array<i64: 8, 128>}, {pipeline_mode = #tpu.pipeline_mode<synchronous>, transform_indices = @transform_3, window_bounds = array<i64: 80, 128>}, {transform_indices = @transform_4, window_bounds = array<i64: 1, 8, 4>}, {transform_indices = @transform_5, window_bounds = array<i64: 1, 8, 128>}]} {
    %c0 = arith.constant 0 : index
    %c0_0 = arith.constant 0 : index
    %c0_1 = arith.constant 0 : index
    %0 = vector.load %arg2[%c0, %c0_0, %c0_1] : memref<1x8x4xf32, #tpu.memory_space<vmem>>, vector<1x8x4xf32>
    %1 = vector.shape_cast %0 : vector<1x8x4xf32> to vector<8x4xf32>
    %c0_2 = arith.constant 0 : index
    %c0_3 = arith.constant 0 : index
    %2 = vector.load %arg3[%c0_2, %c0_3] : memref<4x128xf32, #tpu.memory_space<vmem>>, vector<4x128xf32>
    %cst = arith.constant dense<0.000000e+00> : vector<8x128xf32>
    %3 = tpu.matmul %1, %2, %cst {dimension_numbers = #tpu.dot_dimension_numbers<[1], [0], [0], [1], [0, 0, 1, 1], [], []>} : vector<8x4xf32>, vector<4x128xf32>, vector<8x128xf32> -> vector<8x128xf32>
    %c0_4 = arith.constant 0 : index
    %c0_5 = arith.constant 0 : index
    %c0_6 = arith.constant 0 : index
    %4 = vector.load %arg6[%c0_4, %c0_5, %c0_6] : memref<1x8x4xi32, #tpu.memory_space<vmem>>, vector<1x8x4xi32>
    %5 = vector.shape_cast %4 : vector<1x8x4xi32> to vector<8x4xi32>
    %6 = tpu.iota {dimensions = array<i32: 1>} : vector<8x80xi32>
    %7 = vector.extract_strided_slice %5 {offsets = [0, 0], sizes = [8, 1], strides = [1, 1]} : vector<8x4xi32> to vector<8x1xi32>
    %8 = vector.broadcast %7 : vector<8x1xi32> to vector<8x80xi32>
    %9 = arith.cmpi eq, %6, %8 : vector<8x80xi32>
    %10 = arith.extui %9 : vector<8x80xi1> to vector<8x80xi32>
    %11 = arith.sitofp %10 : vector<8x80xi32> to vector<8x80xf32>
    %12 = vector.extract_strided_slice %5 {offsets = [0, 1], sizes = [8, 1], strides = [1, 1]} : vector<8x4xi32> to vector<8x1xi32>
    %13 = vector.broadcast %12 : vector<8x1xi32> to vector<8x80xi32>
    %14 = arith.cmpi eq, %6, %13 : vector<8x80xi32>
    %15 = arith.extui %14 : vector<8x80xi1> to vector<8x80xi32>
    %16 = arith.sitofp %15 : vector<8x80xi32> to vector<8x80xf32>
    %17 = arith.addf %11, %16 : vector<8x80xf32>
    %18 = vector.extract_strided_slice %5 {offsets = [0, 2], sizes = [8, 1], strides = [1, 1]} : vector<8x4xi32> to vector<8x1xi32>
    %19 = vector.broadcast %18 : vector<8x1xi32> to vector<8x80xi32>
    %20 = arith.cmpi eq, %6, %19 : vector<8x80xi32>
    %21 = arith.extui %20 : vector<8x80xi1> to vector<8x80xi32>
    %22 = arith.sitofp %21 : vector<8x80xi32> to vector<8x80xf32>
    %23 = arith.addf %17, %22 : vector<8x80xf32>
    %24 = vector.extract_strided_slice %5 {offsets = [0, 3], sizes = [8, 1], strides = [1, 1]} : vector<8x4xi32> to vector<8x1xi32>
    %25 = vector.broadcast %24 : vector<8x1xi32> to vector<8x80xi32>
    %26 = arith.cmpi eq, %6, %25 : vector<8x80xi32>
    %27 = arith.extui %26 : vector<8x80xi1> to vector<8x80xi32>
    %28 = arith.sitofp %27 : vector<8x80xi32> to vector<8x80xf32>
    %29 = arith.addf %23, %28 : vector<8x80xf32>
    %c0_7 = arith.constant 0 : index
    %c0_8 = arith.constant 0 : index
    %30 = vector.load %arg5[%c0_7, %c0_8] : memref<80x128xf32, #tpu.memory_space<vmem>>, vector<80x128xf32>
    %cst_9 = arith.constant dense<0.000000e+00> : vector<8x128xf32>
    %31 = tpu.matmul %29, %30, %cst_9 {dimension_numbers = #tpu.dot_dimension_numbers<[1], [0], [0], [1], [0, 0, 1, 1], [], []>} : vector<8x80xf32>, vector<80x128xf32>, vector<8x128xf32> -> vector<8x128xf32>
    %c0_10 = arith.constant 0 : index
    %c0_11 = arith.constant 0 : index
    %32 = vector.load %arg4[%c0_10, %c0_11] : memref<8x128xf32, #tpu.memory_space<vmem>>, vector<8x128xf32>
    %33 = arith.addf %3, %32 : vector<8x128xf32>
    %34 = arith.addf %33, %31 : vector<8x128xf32>
    %c0_12 = arith.constant 0 : index
    %c0_13 = arith.constant 0 : index
    %c0_14 = arith.constant 0 : index
    %35 = vector.load %arg7[%c0_12, %c0_13, %c0_14] : memref<1x8x128xf32, #tpu.memory_space<vmem>>, vector<1x8x128xf32>
    %36 = vector.shape_cast %35 : vector<1x8x128xf32> to vector<8x128xf32>
    %37 = vector.shape_cast %34 : vector<8x128xf32> to vector<1x8x128xf32>
    tpu.vector_store %arg7[%c0_12, %c0_13, %c0_14], %37 {strides = array<i32>} : memref<1x8x128xf32, #tpu.memory_space<vmem>>, vector<1x8x128xf32>,
    return
  }
  func.func @transform_0(%arg0: i32, %arg1: i32) -> (i32, i32, i32) {
    %c0_i32 = arith.constant 0 : i32
    %c0_i32_0 = arith.constant 0 : i32
    return %arg0, %arg1, %c0_i32 : i32, i32, i32
  }
  func.func @transform_1(%arg0: i32, %arg1: i32) -> (i32, i32) {
    %c0_i32 = arith.constant 0 : i32
    %c0_i32_0 = arith.constant 0 : i32
    %c0_i32_1 = arith.constant 0 : i32
    return %c0_i32, %c0_i32_0 : i32, i32
  }
  func.func @transform_2(%arg0: i32, %arg1: i32) -> (i32, i32) {
    %c0_i32 = arith.constant 0 : i32
    %c0_i32_0 = arith.constant 0 : i32
    return %arg1, %c0_i32 : i32, i32
  }
  func.func @transform_3(%arg0: i32, %arg1: i32) -> (i32, i32) {
    %c0_i32 = arith.constant 0 : i32
    %c0_i32_0 = arith.constant 0 : i32
    %c0_i32_1 = arith.constant 0 : i32
    return %c0_i32, %c0_i32_0 : i32, i32
  }
  func.func @transform_4(%arg0: i32, %arg1: i32) -> (i32, i32, i32) {
    %c0_i32 = arith.constant 0 : i32
    %c0_i32_0 = arith.constant 0 : i32
    return %arg0, %arg1, %c0_i32 : i32, i32, i32
  }
  func.func @transform_5(%arg0: i32, %arg1: i32) -> (i32, i32, i32) {
    %c0_i32 = arith.constant 0 : i32
    %c0_i32_0 = arith.constant 0 : i32
    return %arg0, %arg1, %c0_i32 : i32, i32, i32
  }
}

</mosaic_0001>

<llo_original>
// kernel: input_layer_forward.1
$region0: #{input_layer_forward.1}
  #allocation0 [shape = 'u32[]', space=smem, size = 0x4, offset = 0x4, fixed_abs, tag = 'smem constant byte address 0x4 - core index']
  #allocation1 [shape = 'u32[144,128]{1,0:T(1,128)}', space=vmem, size = 0x12000, scoped, tag = 'internal scratch']
  %s0 = inlined_call_operand.vmem [shape: f32[2,8,4], index: 0, kind: input, shape index: {}]
  %s1 = inlined_call_operand.vmem [shape: f32[4,128], index: 1, kind: input, shape index: {}]
  %s2 = inlined_call_operand.vmem [shape: f32[8,128], index: 2, kind: input, shape index: {}]
  %s3 = inlined_call_operand.vmem [shape: f32[80,128], index: 3, kind: input, shape index: {}]
  %s4 = inlined_call_operand.vmem [shape: s32[2,8,4], index: 4, kind: input, shape index: {}]
  %s5 = inlined_call_operand.hbm [shape: f32[2,8,128], index: 5, kind: output, shape index: {}]
  %s6 = sld [smem:[#allocation0]]
  $region53: #{input_layer_forward.1} parent=0
    _
  %s8 = ssub.s32 1, %s6
  %s9 = scalar_select 0, %s8, %s6
  $region1: #{input_layer_forward.1} parent=0
    #allocation2 [shape = 'u8[8192]{0}', space=vmem, size = 0x2000, scoped, tag = 'output window, operand 0']
    #allocation3 [shape = 's32[2]{0}', space=sflag, size = 0x8, scoped, tag = 'scoped memory for input_layer_forward.1']
    %10 = vsyncpa [#allocation3], 0
    %s11 = scalar_lea.sflag [#allocation3], 1
    %12 = vsyncpa %s11, 0
    loop: start=0, step=1, limit=4
    $region2: #{input_layer_forward.1} parent=1 // loop_pre_header
      _
    $region3: #{input_layer_forward.1} parent=1 // loop_header
      %s14 = sphi 0, %s18
      %p15 = scmp.ge.s32.totalorder %s14, 4
      %s21 = sphi 0, %s33
      %s22 = sphi 0, %s29
      %s23 = sphi 0, %s21
      %s24 = sphi 0, %s22
      %s25 = sphi 0, %s23
      %s26 = sphi 0, %s24
      %s38 = sphi 0, %s40
      %s41 = sphi 0, %s38
      %s42 = sphi 0, %s41
      %s58 = sphi 0, %s42
      %s62 = sphi 0, %s62
      %s64 = sphi 0, %s62
      %s65 = sphi 0, %s64
      %s79 = sphi 0, %s65
      %s85 = sphi 0, %s87
      %s88 = sphi 0, %s85
      %s89 = sphi 0, %s88
      %s105 = sphi 0, %s89
      %s109 = sphi 0, %s109
      %s111 = sphi 0, %s109
      %s112 = sphi 0, %s111
      %s126 = sphi 0, %s112
      %s134 = sphi 0, %s136
      %s137 = sphi 0, %s134
      %s138 = sphi 0, %s137
      %s154 = sphi 0, %s138
      %s162 = sphi 0, %s164
      %s165 = sphi 0, %s162
      %s166 = sphi 0, %s165
      %s182 = sphi 0, %s166
    $region4: #{input_layer_forward.1} parent=1 // loop_header_branch
      %17 = sbr.rel (%p15) target = $region8
    $region5: #{input_layer_forward.1} parent=1 // loop_body
      %s19 = ssub.s32 %s14, 1
      %s20 = ssub.s32 %s14, 2
      %s27 = sadd.s32 1, %s22
      %p28 = scmp.ge.s32.totalorder %s27, 1
      %s29 = scalar_select %p28, 0, %s27
      %s30 = sadd.s32 1, %s21
      %s31 = scalar_select %p28, %s30, %s21
      %p32 = scmp.ge.s32.totalorder %s31, 2
      %s33 = scalar_select %p32, 0, %s31
      %s34 = ssub.s32 %s21, %s33
      %s35 = ssub.s32 %s22, %s29
      %s36 = sor.u32 %s34, %s35
      %p37 = scmp.eq.s32.totalorder %s36, 0
      %s39 = sadd.s32 %s38, 1
      %s40 = scalar_select %p37, %s38, %s39
      %p43 = pneg %p37
      %p44 = scmp.eq.s32.totalorder %s14, 1
      %p45 = por %p43, %p44
      %p46 = scmp.ne.s32.totalorder %s38, %s41
      %p47 = scmp.eq.s32.totalorder %s14, 0
      %p48 = por %p46, %p47
      %p49 = scmp.ne.s32.totalorder %s38, %s41
      %p50 = scmp.eq.s32.totalorder %s19, 1
      %p51 = por %p49, %p50
      %p52 = scmp.ne.s32.totalorder %s41, %s42
      %p53 = scmp.eq.s32.totalorder %s19, 0
      %p54 = por %p52, %p53
      %p55 = scmp.ne.s32.totalorder %s41, %s42
      %p56 = scmp.eq.s32.totalorder %s20, 1
      %p57 = por %p55, %p56
      %p59 = scmp.ne.s32.totalorder %s42, %s58
      %p60 = scmp.eq.s32.totalorder %s20, 0
      %p61 = por %p59, %p60
      %s63 = sadd.s32 %s62, 1
      %p66 = scmp.eq.s32.totalorder %s14, 1
      %p67 = scmp.ne.s32.totalorder %s62, %s64
      %p68 = scmp.eq.s32.totalorder %s14, 0
      %p69 = por %p67, %p68
      %p70 = scmp.ne.s32.totalorder %s62, %s64
      %p71 = scmp.eq.s32.totalorder %s19, 1
      %p72 = por %p70, %p71
      %p73 = scmp.ne.s32.totalorder %s64, %s65
      %p74 = scmp.eq.s32.totalorder %s19, 0
      %p75 = por %p73, %p74
      %p76 = scmp.ne.s32.totalorder %s64, %s65
      %p77 = scmp.eq.s32.totalorder %s20, 1
      %p78 = por %p76, %p77
      %p80 = scmp.ne.s32.totalorder %s65, %s79
      %p81 = scmp.eq.s32.totalorder %s20, 0
      %p82 = por %p80, %p81
      %s83 = ssub.s32 %s22, %s29
      %p84 = scmp.eq.s32.totalorder %s83, 0
      %s86 = sadd.s32 %s85, 1
      %s87 = scalar_select %p84, %s85, %s86
      %p90 = pneg %p84
      %p91 = scmp.eq.s32.totalorder %s14, 1
      %p92 = por %p90, %p91
      %p93 = scmp.ne.s32.totalorder %s85, %s88
      %p94 = scmp.eq.s32.totalorder %s14, 0
      %p95 = por %p93, %p94
      %p96 = scmp.ne.s32.totalorder %s85, %s88
      %p97 = scmp.eq.s32.totalorder %s19, 1
      %p98 = por %p96, %p97
      %p99 = scmp.ne.s32.totalorder %s88, %s89
      %p100 = scmp.eq.s32.totalorder %s19, 0
      %p101 = por %p99, %p100
      %p102 = scmp.ne.s32.totalorder %s88, %s89
      %p103 = scmp.eq.s32.totalorder %s20, 1
      %p104 = por %p102, %p103
      %p106 = scmp.ne.s32.totalorder %s89, %s105
      %p107 = scmp.eq.s32.totalorder %s20, 0
      %p108 = por %p106, %p107
      %s110 = sadd.s32 %s109, 1
      %p113 = scmp.eq.s32.totalorder %s14, 1
      %p114 = scmp.ne.s32.totalorder %s109, %s111
      %p115 = scmp.eq.s32.totalorder %s14, 0
      %p116 = por %p114, %p115
      %p117 = scmp.ne.s32.totalorder %s109, %s111
      %p118 = scmp.eq.s32.totalorder %s19, 1
      %p119 = por %p117, %p118
      %p120 = scmp.ne.s32.totalorder %s111, %s112
      %p121 = scmp.eq.s32.totalorder %s19, 0
      %p122 = por %p120, %p121
      %p123 = scmp.ne.s32.totalorder %s111, %s112
      %p124 = scmp.eq.s32.totalorder %s20, 1
      %p125 = por %p123, %p124
      %p127 = scmp.ne.s32.totalorder %s112, %s126
      %p128 = scmp.eq.s32.totalorder %s20, 0
      %p129 = por %p127, %p128
      %s130 = ssub.s32 %s21, %s33
      %s131 = ssub.s32 %s22, %s29
      %s132 = sor.u32 %s130, %s131
      %p133 = scmp.eq.s32.totalorder %s132, 0
      %s135 = sadd.s32 %s134, 1
      %s136 = scalar_select %p133, %s134, %s135
      %p139 = pneg %p133
      %p140 = scmp.eq.s32.totalorder %s14, 1
      %p141 = por %p139, %p140
      %p142 = scmp.ne.s32.totalorder %s134, %s137
      %p143 = scmp.eq.s32.totalorder %s14, 0
      %p144 = por %p142, %p143
      %p145 = scmp.ne.s32.totalorder %s134, %s137
      %p146 = scmp.eq.s32.totalorder %s19, 1
      %p147 = por %p145, %p146
      %p148 = scmp.ne.s32.totalorder %s137, %s138
      %p149 = scmp.eq.s32.totalorder %s19, 0
      %p150 = por %p148, %p149
      %p151 = scmp.ne.s32.totalorder %s137, %s138
      %p152 = scmp.eq.s32.totalorder %s20, 1
      %p153 = por %p151, %p152
      %p155 = scmp.ne.s32.totalorder %s138, %s154
      %p156 = scmp.eq.s32.totalorder %s20, 0
      %p157 = por %p155, %p156
      %s158 = ssub.s32 %s21, %s33
      %s159 = ssub.s32 %s22, %s29
      %s160 = sor.u32 %s158, %s159
      %p161 = scmp.eq.s32.totalorder %s160, 0
      %s163 = sadd.s32 %s162, 1
      %s164 = scalar_select %p161, %s162, %s163
      %p167 = pneg %p161
      %p168 = scmp.eq.s32.totalorder %s14, 1
      %p169 = por %p167, %p168
      %p170 = scmp.ne.s32.totalorder %s162, %s165
      %p171 = scmp.eq.s32.totalorder %s14, 0
      %p172 = por %p170, %p171
      %p173 = scmp.ne.s32.totalorder %s162, %s165
      %p174 = scmp.eq.s32.totalorder %s19, 1
      %p175 = por %p173, %p174
      %p176 = scmp.ne.s32.totalorder %s165, %s166
      %p177 = scmp.eq.s32.totalorder %s19, 0
      %p178 = por %p176, %p177
      %p179 = scmp.ne.s32.totalorder %s165, %s166
      %p180 = scmp.eq.s32.totalorder %s20, 1
      %p181 = por %p179, %p180
      %p183 = scmp.ne.s32.totalorder %s166, %s182
      %p184 = scmp.eq.s32.totalorder %s20, 0
      %p185 = por %p183, %p184
      %p186 = scmp.le.s32.totalorder 1, %s14
      %p187 = scmp.lt.s32.totalorder %s14, 3
      %p188 = pnand %p186, %p187
      %p189 = pneg %p188
      // Predicated region
      $region9: #{input_layer_forward.1} parent=5 // pred_check
        _
      $region10: #{input_layer_forward.1} parent=5 // pred_check_branch
        %191 = sbr.rel (%p188) target = $region12
      $region11: #{input_layer_forward.1} parent=5 // pred_region
        %s192 = ssub.s32 %s14, 1
        // Predicated region
        $region13: #{input_layer_forward.1} parent=11 // pred_check
          %p193 = pneg %p75
        $region14: #{input_layer_forward.1} parent=11 // pred_check_branch
          %195 = sbr.rel (%p193) target = $region16
        $region15: #{input_layer_forward.1} parent=11 // pred_region
          _
        $region16: #{input_layer_forward.1} parent=11 // pred_fallthru
          _
        // Predicated region
        $region17: #{input_layer_forward.1} parent=11 // pred_check
          %p196 = pneg %p101
        $region18: #{input_layer_forward.1} parent=11 // pred_check_branch
          %198 = sbr.rel (%p196) target = $region20
        $region19: #{input_layer_forward.1} parent=11 // pred_region
          %p199 = scmp.lt.s32.totalorder %s24, 0
          %s200 = scalar_select %p199, %s24, 0
          %s201 = smul.addr %s200, 8
          %s202 = scalar_lea.vmem %s2, %s201
        $region20: #{input_layer_forward.1} parent=11 // pred_fallthru
          _
        // Predicated region
        $region21: #{input_layer_forward.1} parent=11 // pred_check
          %p203 = pneg %p122
        $region22: #{input_layer_forward.1} parent=11 // pred_check_branch
          %205 = sbr.rel (%p203) target = $region24
        $region23: #{input_layer_forward.1} parent=11 // pred_region
          _
        $region24: #{input_layer_forward.1} parent=11 // pred_fallthru
          _
      $region12: #{input_layer_forward.1} parent=5 // pred_fallthru
        _
      %p206 = scmp.lt.s32.totalorder %s14, 2
      // Predicated region
      $region25: #{input_layer_forward.1} parent=5 // pred_check
        %p207 = pneg %p206
      $region26: #{input_layer_forward.1} parent=5 // pred_check_branch
        %209 = sbr.rel (%p207) target = $region28
      $region27: #{input_layer_forward.1} parent=5 // pred_region
        // Predicated region
        $region29: #{input_layer_forward.1} parent=27 // pred_check
          %p210 = pneg %p48
        $region30: #{input_layer_forward.1} parent=27 // pred_check_branch
          %212 = sbr.rel (%p210) target = $region32
        $region31: #{input_layer_forward.1} parent=27 // pred_region
          %p213 = scmp.lt.s32.totalorder %s21, 1
          %s214 = scalar_select %p213, %s21, 1
          %p215 = scmp.lt.s32.totalorder %s22, 0
          %s216 = scalar_select %p215, %s22, 0
          %s217 = sadd.s32 %s216, %s214
          %s218 = smul.addr %s217, 8
          %s219 = scalar_lea.vmem %s0, %s218
        $region32: #{input_layer_forward.1} parent=27 // pred_fallthru
          _
        // Predicated region
        $region33: #{input_layer_forward.1} parent=27 // pred_check
          %p220 = pneg %p144
        $region34: #{input_layer_forward.1} parent=27 // pred_check_branch
          %222 = sbr.rel (%p220) target = $region36
        $region35: #{input_layer_forward.1} parent=27 // pred_region
          %p223 = scmp.lt.s32.totalorder %s21, 1
          %s224 = scalar_select %p223, %s21, 1
          %p225 = scmp.lt.s32.totalorder %s22, 0
          %s226 = scalar_select %p225, %s22, 0
          %s227 = sadd.s32 %s226, %s224
          %s228 = smul.addr %s227, 8
          %s229 = scalar_lea.vmem %s4, %s228
        $region36: #{input_layer_forward.1} parent=27 // pred_fallthru
          _
      $region28: #{input_layer_forward.1} parent=5 // pred_fallthru
        _
      %p230 = scmp.le.s32.totalorder 1, %s14
      %p231 = scmp.lt.s32.totalorder %s14, 3
      %p232 = pnand %p230, %p231
      %p233 = pneg %p232
      // Predicated region
      $region37: #{input_layer_forward.1} parent=5 // pred_check
        _
      $region38: #{input_layer_forward.1} parent=5 // pred_check_branch
        %235 = sbr.rel (%p232) target = $region40
      $region39: #{input_layer_forward.1} parent=5 // pred_region
        %s236 = ssub.s32 %s14, 1
        %p237 = scmp.lt.s32.totalorder %s23, 1
        %s238 = scalar_select %p237, %s23, 1
        %p239 = scmp.lt.s32.totalorder %s24, 0
        %s240 = scalar_select %p239, %s24, 0
        %s241 = sadd.s32 %s240, %s238
        %s242 = smul.addr %s241, 8
        %s243 = scalar_lea.vmem %s0, %s242
        %p244 = pneg %p54
        %p245 = pneg %p51
        %p246 = pneg %p75
        %p247 = pneg %p72
        %p248 = scmp.lt.s32.totalorder %s24, 0
        %s249 = scalar_select %p248, %s24, 0
        %s250 = smul.addr %s249, 8
        %s251 = scalar_lea.vmem %s2, %s250
        %p252 = pneg %p101
        %p253 = pneg %p98
        %p254 = pneg %p122
        %p255 = pneg %p119
        %p256 = scmp.lt.s32.totalorder %s23, 1
        %s257 = scalar_select %p256, %s23, 1
        %p258 = scmp.lt.s32.totalorder %s24, 0
        %s259 = scalar_select %p258, %s24, 0
        %s260 = sadd.s32 %s259, %s257
        %s261 = smul.addr %s260, 8
        %s262 = scalar_lea.vmem %s4, %s261
        %p263 = pneg %p150
        %p264 = pneg %p147
        %p265 = pneg %p178
        %p266 = pneg %p175
        %s267 = sand.u32 %s165, 1
        %s268 = scalar_lea.sflag [#allocation3], %s267
        %s269 = sand.u32 %s165, 1
        %s270 = smul.addr %s269, 8
        %s271 = scalar_lea.vmem [#allocation2], %s270
        %p272 = scmp.lt.s32.totalorder %s23, 1
        %s273 = scalar_select %p272, %s23, 1
        %p274 = scmp.lt.s32.totalorder %s24, 0
        %s275 = scalar_select %p274, %s24, 0
        %s276 = sadd.s32 %s275, %s273
        %s277 = smul.addr %s276, 8
        %s278 = scalar_lea.vmem %s0, %s277
        %p279 = scmp.lt.s32.totalorder %s24, 0
        %s280 = scalar_select %p279, %s24, 0
        %s281 = smul.addr %s280, 8
        %s282 = scalar_lea.vmem %s2, %s281
        %p283 = scmp.lt.s32.totalorder %s23, 1
        %s284 = scalar_select %p283, %s23, 1
        %p285 = scmp.lt.s32.totalorder %s24, 0
        %s286 = scalar_select %p285, %s24, 0
        %s287 = sadd.s32 %s286, %s284
        %s288 = smul.addr %s287, 8
        %s289 = scalar_lea.vmem %s4, %s288
        %v290 = vld [vmem:[%s278] sm:$0xff]
        %v291 = vld [vmem:[%s1] sm:$0xf]
        %v292 = vld [vmem:[%s289] sm:$0xff]
        %v293 = vlaneseq
        %v294 = vand.u32 %v293, 127
        %295 = vset.pattern.permute.xlu0 0
        %296 = vperm.xlu0 %295, %v292
        %v297 = vpop.permute.xlu0 %296
        %vm298 = vcmp.eq.s32.totalorder %v294, %v297
        %v299 = vsel %vm298, 1, 0
        %v300 = vcvt.s32.f32 %v299
        %301 = vset.pattern.permute.xlu0 1
        %302 = vperm.xlu0 %301, %v292
        %v303 = vpop.permute.xlu0 %302
        %vm304 = vcmp.eq.s32.totalorder %v294, %v303
        %v305 = vsel %vm304, 1, 0
        %v306 = vcvt.s32.f32 %v305
        %v307 = vadd.f32 %v300, %v306
        %308 = vset.pattern.permute.xlu0 2
        %309 = vperm.xlu0 %308, %v292
        %v310 = vpop.permute.xlu0 %309
        %vm311 = vcmp.eq.s32.totalorder %v294, %v310
        %v312 = vsel %vm311, 1, 0
        %v313 = vcvt.s32.f32 %v312
        %v314 = vadd.f32 %v307, %v313
        %315 = vset.pattern.permute.xlu0 3
        %316 = vperm.xlu0 %315, %v292
        %v317 = vpop.permute.xlu0 %316
        %vm318 = vcmp.eq.s32.totalorder %v294, %v317
        %v319 = vsel %vm318, 1, 0
        %v320 = vcvt.s32.f32 %v319
        %v321 = vadd.f32 %v314, %v320
        %v322 = vld [vmem:[%s3] sm:$0xff]
        %v323 = vld [vmem:[%s3 + $0x8] sm:$0xff]
        %v324 = vld [vmem:[%s3 + $0x10] sm:$0xff]
        %v325 = vld [vmem:[%s3 + $0x18] sm:$0xff]
        %v326 = vld [vmem:[%s3 + $0x20] sm:$0xff]
        %v327 = vld [vmem:[%s3 + $0x28] sm:$0xff]
        %v328 = vld [vmem:[%s3 + $0x30] sm:$0xff]
        %v329 = vld [vmem:[%s3 + $0x38] sm:$0xff]
        %v330 = vld [vmem:[%s3 + $0x40] sm:$0xff]
        %v331 = vld [vmem:[%s3 + $0x48] sm:$0xff]
        %vm332 = vcmask 654336
        %v334 = vsel %vm332, %v321, 0
        %336 = vmatprep.subr.mxu0 0.0
        %337 = vmatpush1.msra.mxu0 %v322
        %338 = vmatprep.subr.mxu0 0.0
        %339 = vmatpush1.msra.mxu0 %v323
        %340 = vmatprep.subr.mxu0 0.0
        %341 = vmatpush1.msra.mxu0 %v324
        %342 = vmatprep.subr.mxu0 0.0
        %343 = vmatpush1.msra.mxu0 %v325
        %344 = vmatprep.subr.mxu0 0.0
        %345 = vmatpush1.msra.mxu0 %v326
        %346 = vmatprep.subr.mxu0 0.0
        %347 = vmatpush1.msra.mxu0 %v327
        %348 = vmatprep.subr.mxu0 0.0
        %349 = vmatpush1.msra.mxu0 %v328
        %350 = vmatprep.subr.mxu0 0.0
        %351 = vmatpush1.msra.mxu0 %v329
        %352 = vmatprep.subr.mxu0 0.0
        %353 = vmatpush1.msra.mxu0 %v330
        %354 = vmatprep.subr.mxu0 0.0
        %355 = vmatpush1.msra.mxu0 %v331
        %356 = vmatprep.subr.mxu0 0.0
        %357 = vmatpush1.msra.mxu0 0.0
        %358 = vmatprep.subr.mxu0 0.0
        %359 = vmatpush1.msra.mxu0 0.0
        %360 = vmatprep.subr.mxu0 0.0
        %361 = vmatpush1.msra.mxu0 0.0
        %362 = vmatprep.subr.mxu0 0.0
        %363 = vmatpush1.msra.mxu0 0.0
        %364 = vmatprep.subr.mxu0 0.0
        %365 = vmatpush1.msra.mxu0 0.0
        %366 = vmatprep.subr.mxu0 0.0
        %367 = vmatpush1.msra.mxu0 0.0
        %368 = vmatprep.subr.mxu0 0.0
        %369 = vmatpush1.msra.mxu0 0.0
        %370 = vmatprep.subr.mxu0 0.0
        %371 = vmatpush1.msra.mxu0 0.0
        %372 = vmatprep.subr.mxu0 0.0
        %373 = vmatpush1.msra.mxu0 0.0
        %374 = vmatprep.subr.mxu0 0.0
        %375 = vmatpush1.msra.mxu0 0.0
        %376 = vmatprep.subr.mxu0 0.0
        %377 = vmatpush1.msra.mxu0 0.0
        %378 = vmatprep.subr.mxu0 0.0
        %379 = vmatpush1.msra.mxu0 0.0
        %380 = vmatprep.subr.mxu0 0.0
        %381 = vmatpush1.msra.mxu0 0.0
        %382 = vmatprep.subr.mxu0 0.0
        %383 = vmatpush1.msra.mxu0 0.0
        %384 = vmatprep.subr.mxu0 0.0
        %385 = vmatpush1.msra.mxu0 0.0
        %386 = vmatprep.subr.mxu0 0.0
        %387 = vmatpush1.msra.mxu0 0.0
        %388 = vmatprep.subr.mxu0 0.0
        %389 = vmatpush1.msra.mxu0 0.0
        %390 = vmatprep.subr.mxu0 0.0
        %391 = vmatpush1.msra.mxu0 0.0
        %392 = vmatprep.subr.mxu0 0.0
        %393 = vmatpush1.msra.mxu0 0.0
        %394 = vmatprep.subr.mxu0 0.0
        %395 = vmatpush1.msra.mxu0 0.0
        %396 = vmatprep.subr.mxu0 0.0
        %397 = vmatpush1.msra.mxu0 0.0
        %398 = vmatprep.subr.mxu0 0.0
        %399 = vmatpush1.msra.mxu0 0.0
        %400 = vmatprep.mubr.f32.mxu0 0.0
        %401 = vmatmul.mubr.f32.gmra.mrb[0].mxu0 %v334
        %v402 = vpop.f32.mrb[0].mxu0
        %v403 = vadd.f32 0.0, %v402
        %v404 = vpop.f32.mrb[0].mxu0
        %405 = vdwg.mxu0
        %v406 = vld [vmem:[%s282] sm:$0xff]
        %vm407 = vcmask 31744
        %v409 = vsel %vm407, %v290, 0
        %vm411 = vcmask 1043456
        %v413 = vsel %vm411, %v291, 0
        %415 = vmatprep.subr.mxu0 0.0
        %416 = vmatpush1.msra.mxu0 %v413
        %417 = vmatprep.subr.mxu0 0.0
        %418 = vmatpush1.msra.mxu0 0.0
        %419 = vmatprep.subr.mxu0 0.0
        %420 = vmatpush1.msra.mxu0 0.0
        %421 = vmatprep.subr.mxu0 0.0
        %422 = vmatpush1.msra.mxu0 0.0
        %423 = vmatprep.subr.mxu0 0.0
        %424 = vmatpush1.msra.mxu0 0.0
        %425 = vmatprep.subr.mxu0 0.0
        %426 = vmatpush1.msra.mxu0 0.0
        %427 = vmatprep.subr.mxu0 0.0
        %428 = vmatpush1.msra.mxu0 0.0
        %429 = vmatprep.subr.mxu0 0.0
        %430 = vmatpush1.msra.mxu0 0.0
        %431 = vmatprep.subr.mxu0 0.0
        %432 = vmatpush1.msra.mxu0 0.0
        %433 = vmatprep.subr.mxu0 0.0
        %434 = vmatpush1.msra.mxu0 0.0
        %435 = vmatprep.subr.mxu0 0.0
        %436 = vmatpush1.msra.mxu0 0.0
        %437 = vmatprep.subr.mxu0 0.0
        %438 = vmatpush1.msra.mxu0 0.0
        %439 = vmatprep.subr.mxu0 0.0
        %440 = vmatpush1.msra.mxu0 0.0
        %441 = vmatprep.subr.mxu0 0.0
        %442 = vmatpush1.msra.mxu0 0.0
        %443 = vmatprep.subr.mxu0 0.0
        %444 = vmatpush1.msra.mxu0 0.0
        %445 = vmatprep.subr.mxu0 0.0
        %446 = vmatpush1.msra.mxu0 0.0
        %447 = vmatprep.subr.mxu0 0.0
        %448 = vmatpush1.msra.mxu0 0.0
        %449 = vmatprep.subr.mxu0 0.0
        %450 = vmatpush1.msra.mxu0 0.0
        %451 = vmatprep.subr.mxu0 0.0
        %452 = vmatpush1.msra.mxu0 0.0
        %453 = vmatprep.subr.mxu0 0.0
        %454 = vmatpush1.msra.mxu0 0.0
        %455 = vmatprep.subr.mxu0 0.0
        %456 = vmatpush1.msra.mxu0 0.0
        %457 = vmatprep.subr.mxu0 0.0
        %458 = vmatpush1.msra.mxu0 0.0
        %459 = vmatprep.subr.mxu0 0.0
        %460 = vmatpush1.msra.mxu0 0.0
        %461 = vmatprep.subr.mxu0 0.0
        %462 = vmatpush1.msra.mxu0 0.0
        %463 = vmatprep.subr.mxu0 0.0
        %464 = vmatpush1.msra.mxu0 0.0
        %465 = vmatprep.subr.mxu0 0.0
        %466 = vmatpush1.msra.mxu0 0.0
        %467 = vmatprep.subr.mxu0 0.0
        %468 = vmatpush1.msra.mxu0 0.0
        %469 = vmatprep.subr.mxu0 0.0
        %470 = vmatpush1.msra.mxu0 0.0
        %471 = vmatprep.subr.mxu0 0.0
        %472 = vmatpush1.msra.mxu0 0.0
        %473 = vmatprep.subr.mxu0 0.0
        %474 = vmatpush1.msra.mxu0 0.0
        %475 = vmatprep.subr.mxu0 0.0
        %476 = vmatpush1.msra.mxu0 0.0
        %477 = vmatprep.subr.mxu0 0.0
        %478 = vmatpush1.msra.mxu0 0.0
        %479 = vmatprep.mubr.f32.mxu0 0.0
        %480 = vmatmul.mubr.f32.gmra.mrb[0].mxu0 %v409
        %v481 = vpop.f32.mrb[0].mxu0
        %v482 = vadd.f32 %v406, %v481
        %v483 = vpop.f32.mrb[0].mxu0
        %484 = vdwg.mxu0
        %v485 = vadd.f32 %v482, %v403
        %486 = vst [vmem:[%s271] sm:$0xff] %v485
        %s487 = sand.u32 %s165, 1
        %s488 = scalar_lea.sflag [#allocation3], %s487
        %s489 = sand.u32 %s165, 1
        %s490 = smul.addr %s489, 8
        %s491 = scalar_lea.vmem [#allocation2], %s490
        // Predicated region
        $region41: #{input_layer_forward.1} parent=39 // pred_check
          %p492 = pneg %p175
        $region42: #{input_layer_forward.1} parent=39 // pred_check_branch
          %494 = sbr.rel (%p492) target = $region44
        $region43: #{input_layer_forward.1} parent=39 // pred_region
          %s496 = ssub.s32 128, 128
          %497 = vsyncadd %s488, %s496
          %s498 = sadd.s32 %s24, %s23
          %s499 = smul.addr %s498, 128
          %s500 = scalar_lea.hbm %s5, %s499
          %s502 = sshll.u32 %s491, 4
          %s503 = int_to_ptr.vmem [resolvable:$true] %s502
          %505 = dma.vmem_to_hbm [thread:$0]  %s503, 128, %s500, %s488
        $region44: #{input_layer_forward.1} parent=39 // pred_fallthru
          _
      $region40: #{input_layer_forward.1} parent=5 // pred_fallthru
        _
      %p506 = scmp.le.s32.totalorder 2, %s14
      // Predicated region
      $region45: #{input_layer_forward.1} parent=5 // pred_check
        %p507 = pneg %p506
      $region46: #{input_layer_forward.1} parent=5 // pred_check_branch
        %509 = sbr.rel (%p507) target = $region48
      $region47: #{input_layer_forward.1} parent=5 // pred_region
        %s510 = ssub.s32 %s14, 2
        // Predicated region
        $region49: #{input_layer_forward.1} parent=47 // pred_check
          %p511 = pneg %p181
        $region50: #{input_layer_forward.1} parent=47 // pred_check_branch
          %513 = sbr.rel (%p511) target = $region52
        $region51: #{input_layer_forward.1} parent=47 // pred_region
          %s514 = sand.u32 %s166, 1
          %s515 = scalar_lea.sflag [#allocation3], %s514
          %s516 = sand.u32 %s166, 1
          %s517 = smul.addr %s516, 8
          %s518 = scalar_lea.vmem [#allocation2], %s517
          %519 = dma.done %s515, 128
        $region52: #{input_layer_forward.1} parent=47 // pred_fallthru
          _
      $region48: #{input_layer_forward.1} parent=5 // pred_fallthru
        _
    $region6: #{input_layer_forward.1} parent=1 // loop_footer
      %s18 = sadd.s32 1, %s14
    $region7: #{input_layer_forward.1} parent=1 // loop_footer_branch
      %13 = sbr.rel target = $region3
    $region8: #{input_layer_forward.1} parent=1 // loop_exit
      _
    %520 = vsyncpa [#allocation3], 1
    %s521 = scalar_lea.sflag [#allocation3], 1
    %522 = vsyncpa %s521, 1

</llo_original>
